<compile_context>
chip_gen: v7x
topology: tpu7x:2x2x1
jax: 0.10.0
libtpu: 0.0.40
codegen_flags: <defaults>
</compile_context>

<pallas_src>
import jax
import jax.numpy as jnp
from jax.experimental import pallas as pl
from jax.experimental.pallas import tpu as pltpu

BN_EPS = 1e-5
LANE = 128
SUBLANE = 8
VMEM_BUDGET = 48 * 1024 * 1024      # conservative vs. v7x's 64 MiB per-TC VMEM


def _round_up(x, m):
    return ((x + m - 1) // m) * m


# --------------------------------------------------------------------------
# Kernels
# --------------------------------------------------------------------------
def make_net_kernel(num_hidden):
    """Hidden-layer variant (num_hidden >= 1).

    refs: x (TB,P) bf16 | w_hid (H,P,P) bf16 | b_hid (H8,P) f32
          w_lin (P,PO) bf16 | w_out (P,PO) bf16 | b_cat (1,PO) f32
          y (TB,PO) f32
    """

    def kernel(x_ref, w_hid_ref, b_hid_ref, w_lin_ref, w_out_ref, b_cat_ref,
               y_ref):
        h = x_ref[...]                                        # bf16 (TB, P)
        for i in range(num_hidden):                           # static unroll
            w = w_hid_ref[i]                                  # (P, P) bf16
            b = b_hid_ref[pl.ds(i, 1), :]                     # (1, P) f32
            a = jnp.dot(h, w, preferred_element_type=jnp.float32) + b
            a = jnp.maximum(a, 0.0)                           # ReLU, Dropout=id
            h = a.astype(jnp.bfloat16)

        # Residual + output linear as two accumulated dots (no concat buffer).
        # Re-read x here so it is not live across the hidden loop.
        x_res = x_ref[...]
        y = (jnp.dot(x_res, w_lin_ref[...], preferred_element_type=jnp.float32)
             + jnp.dot(h, w_out_ref[...], preferred_element_type=jnp.float32)
             + b_cat_ref[...])
        y_ref[...] = y.astype(y_ref.dtype)

    return kernel


def net_kernel_no_hidden(x_ref, w_lin_ref, w_out_ref, b_cat_ref, y_ref):
    """No-hidden-layer variant: net is a single Linear(n_in, n_out)."""
    x = x_ref[...]
    y = (jnp.dot(x, w_lin_ref[...], preferred_element_type=jnp.float32)
         + jnp.dot(x, w_out_ref[...], preferred_element_type=jnp.float32)
         + b_cat_ref[...])
    y_ref[...] = y.astype(y_ref.dtype)


# --------------------------------------------------------------------------
# Parameter prep: fold BN, pad to lane-aligned tiles, pack into bf16 slabs.
# (Done once per model, outside the hot path.)
# --------------------------------------------------------------------------
def fold_and_pack(params, n_in, n_out):
    hidden = params["hidden"]
    H = len(hidden)
    widths = [n_in] + [int(l["W"].shape[1]) for l in hidden]
    P = _round_up(max(widths), LANE)
    PO = _round_up(n_out, LANE)

    packed = dict(P=P, PO=PO, H=H, n_in=n_in, n_out=n_out)

    if H > 0:
        H8 = _round_up(H, SUBLANE)
        w_hid = jnp.zeros((H, P, P), jnp.float32)
        b_hid = jnp.zeros((H8, P), jnp.float32)
        for i, l in enumerate(hidden):
            a, b = l["W"].shape
            scale = l["gamma"] * jax.lax.rsqrt(l["var"] + BN_EPS)   # (1, b)
            Wf = l["W"] * scale                                     # (a, b)
            bf = (l["b"] - l["mean"]) * scale + l["beta"]           # (1, b)
            w_hid = w_hid.at[i, :a, :b].set(Wf)
            b_hid = b_hid.at[i, :b].set(bf[0])
        packed["w_hid"] = w_hid.astype(jnp.bfloat16)
        packed["b_hid"] = b_hid                                     # f32

    h_last = widths[-1]
    w_lin = jnp.zeros((P, PO), jnp.float32).at[:n_in, :n_out].set(
        params["W_lin"])
    w_out = jnp.zeros((P, PO), jnp.float32).at[:h_last, :n_out].set(
        params["W_out"])
    b_cat = jnp.zeros((1, PO), jnp.float32).at[:, :n_out].set(
        params["b_lin"] + params["b_out"])
    packed["w_lin"] = w_lin.astype(jnp.bfloat16)
    packed["w_out"] = w_out.astype(jnp.bfloat16)
    packed["b_cat"] = b_cat                                         # f32
    return packed


# --------------------------------------------------------------------------
# Forward wrapper: single pallas_call, 1-D grid over batch tiles.
# --------------------------------------------------------------------------
def net_forward(x, packed, sig):
    B, n_in = x.shape
    P, PO, H, n_out = packed["P"], packed["PO"], packed["H"], packed["n_out"]

    # Resident weight bytes (stay in VMEM for the whole grid).
    weight_bytes = (packed["w_lin"].size * 2 + packed["w_out"].size * 2
                    + packed["b_cat"].size * 4)
    if H > 0:
        weight_bytes += packed["w_hid"].size * 2 + packed["b_hid"].size * 4

    # Largest batch tile whose double-buffered x/y tiles + resident weights
    # fit the (v7x-safe) VMEM budget.
    TB = 512
    while TB > SUBLANE:
        tile_bytes = 2 * (TB * P * 2) + 2 * (TB * PO * 4)
        if weight_bytes + tile_bytes <= VMEM_BUDGET:
            break
        TB //= 2
    tile_bytes = 2 * (TB * P * 2) + 2 * (TB * PO * 4)

    Bp = _round_up(B, SUBLANE)
    if Bp <= TB:
        TB = Bp
    else:
        Bp = _round_up(Bp, TB)
    num_tiles = Bp // TB

    x_pad = jnp.zeros((Bp, P), jnp.bfloat16).at[:B, :n_in].set(
        x.astype(jnp.bfloat16))

    flops = 2 * Bp * (H * P * P + 2 * P * PO)
    bytes_accessed = x_pad.size * 2 + weight_bytes + Bp * PO * 4
    vmem_limit = int(min(VMEM_BUDGET,
                         max(2 * (weight_bytes + tile_bytes), 4 << 20)))

    x_spec = pl.BlockSpec((TB, P), lambda i: (i, 0))
    y_spec = pl.BlockSpec((TB, PO), lambda i: (i, 0))
    wlin_spec = pl.BlockSpec((P, PO), lambda i: (0, 0))
    wout_spec = pl.BlockSpec((P, PO), lambda i: (0, 0))
    bcat_spec = pl.BlockSpec((1, PO), lambda i: (0, 0))

    compiler_params = pltpu.CompilerParams(
        dimension_semantics=("parallel",),       # lets v7x use both TCs
        vmem_limit_bytes=vmem_limit,
    )
    cost = pl.CostEstimate(flops=flops, transcendentals=0,
                           bytes_accessed=bytes_accessed)

    if H > 0:
        H8 = packed["b_hid"].shape[0]
        whid_spec = pl.BlockSpec((H, P, P), lambda i: (0, 0, 0))
        bhid_spec = pl.BlockSpec((H8, P), lambda i: (0, 0))
        y_pad = pl.pallas_call(
            make_net_kernel(H),
            out_shape=jax.ShapeDtypeStruct((Bp, PO), jnp.float32),
            grid=(num_tiles,),
            in_specs=[x_spec, whid_spec, bhid_spec, wlin_spec, wout_spec,
                      bcat_spec],
            out_specs=y_spec,
            compiler_params=compiler_params,
            cost_estimate=cost,
        )(x_pad, packed["w_hid"], packed["b_hid"], packed["w_lin"],
          packed["w_out"], packed["b_cat"])
    else:
        y_pad = pl.pallas_call(
            net_kernel_no_hidden,
            out_shape=jax.ShapeDtypeStruct((Bp, PO), jnp.float32),
            grid=(num_tiles,),
            in_specs=[x_spec, wlin_spec, wout_spec, bcat_spec],
            out_specs=y_spec,
            compiler_params=compiler_params,
            cost_estimate=cost,
        )(x_pad, packed["w_lin"], packed["w_out"], packed["b_cat"])

    y = y_pad[:B, :n_out]
    # sig.expand(batch, n_out) is pure data movement -> keep it in XLA.
    sig_exp = jnp.broadcast_to(sig, (B, n_out))
    return y, sig_exp


# --------------------------------------------------------------------------
# Pure-JAX f32 reference (unfolded BN) for correctness validation.
# --------------------------------------------------------------------------
def reference_forward(x, params):
    y_lin = x @ params["W_lin"] + params["b_lin"]
    h = x
    for layer in params["hidden"]:
        h = h @ layer["W"] + layer["b"]
        h = ((h - layer["mean"]) * jax.lax.rsqrt(layer["var"] + BN_EPS)
             * layer["gamma"] + layer["beta"])
        h = jnp.maximum(h, 0.0)
    y_net = h @ params["W_out"] + params["b_out"]
    sig_exp = jnp.broadcast_to(params["sig"],
                               (x.shape[0], params["sig"].shape[1]))
    return y_lin + y_net, sig_exp


# --------------------------------------------------------------------------
# Deterministic parameter init mirroring Net.__init__
# --------------------------------------------------------------------------
def init_params(key, n_in, n_out, hidden_layer_sizes, n_fit=64):
    keys = jax.random.split(key, 3 + 2 * (len(hidden_layer_sizes) + 1))
    k_iter = iter(keys)

    # Least-squares init of self.lin from synthetic (X, Y), as in __init__.
    # TODO(synk): torch uses np.linalg.solve on normal equations too; a QR
    # solve would be better conditioned but would not bit-match the module.
    X_fit = jax.random.normal(next(k_iter), (n_fit, n_in), dtype=jnp.float32)
    Y_fit = jax.random.normal(next(k_iter), (n_fit, n_out), dtype=jnp.float32)
    X_ = jnp.concatenate([X_fit, jnp.ones((n_fit, 1), jnp.float32)], axis=1)
    Theta = jnp.linalg.solve(X_.T @ X_, X_.T @ Y_fit)      # (n_in+1, n_out)
    W_lin = Theta[:-1, :]                                  # stored as (in, out)
    b_lin = Theta[-1:, :]                                  # (1, n_out)

    layer_sizes = [n_in] + list(hidden_layer_sizes)
    hidden = []
    for a, b in zip(layer_sizes[:-1], layer_sizes[1:]):
        bound = 1.0 / jnp.sqrt(jnp.float32(a))
        W = jax.random.uniform(next(k_iter), (a, b), jnp.float32, -bound, bound)
        bb = jax.random.uniform(next(k_iter), (1, b), jnp.float32, -bound, bound)
        hidden.append(dict(
            W=W, b=bb,
            gamma=jnp.ones((1, b), jnp.float32),
            beta=jnp.zeros((1, b), jnp.float32),
            mean=jnp.zeros((1, b), jnp.float32),
            var=jnp.ones((1, b), jnp.float32),
        ))

    a_last = layer_sizes[-1]
    bound = 1.0 / jnp.sqrt(jnp.float32(a_last))
    W_out = jax.random.uniform(next(k_iter), (a_last, n_out), jnp.float32,
                               -bound, bound)
    b_out = jax.random.uniform(next(k_iter), (1, n_out), jnp.float32,
                               -bound, bound)

    sig = jnp.ones((1, n_out), jnp.float32)   # Parameter(torch.ones(1, n_out))

    return dict(W_lin=W_lin, b_lin=b_lin, hidden=hidden,
                W_out=W_out, b_out=b_out, sig=sig)


if __name__ == "__main__":
    batch, n_in, n_out = 8, 16, 4
    hidden_layer_sizes = [32, 16]

    key = jax.random.PRNGKey(0)
    k_params, k_x = jax.random.split(key)
    params = init_params(k_params, n_in, n_out, hidden_layer_sizes)
    x = jax.random.normal(k_x, (batch, n_in), dtype=jnp.float32)

    packed = fold_and_pack(params, n_in, n_out)
    y, sig_exp = net_forward(x, packed, params["sig"])
    jax.block_until_ready((y, sig_exp))

    y_ref, sig_ref = reference_forward(x, params)
    assert y.shape == (batch, n_out) and sig_exp.shape == (batch, n_out)
    # bf16 weights/activations (f32 accumulation) -> loosened tolerance.
    assert jnp.allclose(y, y_ref, atol=5e-2, rtol=5e-2), (
        f"max abs err {jnp.max(jnp.abs(y - y_ref))}")
    assert jnp.allclose(sig_exp, sig_ref)

    print("KERNEL_OK")
</pallas_src>

<mosaic_0001>
module attributes {stable_mosaic.version = 11 : i64} {
  func.func @kernel(%arg0: i32, %arg1: memref<8x128xbf16, #tpu.memory_space<vmem>>, %arg2: memref<2x128x128xbf16, #tpu.memory_space<vmem>>, %arg3: memref<8x128xf32, #tpu.memory_space<vmem>>, %arg4: memref<128x128xbf16, #tpu.memory_space<vmem>>, %arg5: memref<128x128xbf16, #tpu.memory_space<vmem>>, %arg6: memref<1x128xf32, #tpu.memory_space<vmem>>, %arg7: memref<8x128xf32, #tpu.memory_space<vmem>>) attributes {dimension_semantics = [#tpu.dimension_semantics<parallel>], iteration_bounds = array<i64: 1>, scalar_prefetch = 0 : i64, scratch_operands = 0 : i64, tpu.core_type = #tpu.core_type<tc>, window_params = [{transform_indices = @transform_0, window_bounds = array<i64: 8, 128>}, {pipeline_mode = #tpu.pipeline_mode<synchronous>, transform_indices = @transform_1, window_bounds = array<i64: 2, 128, 128>}, {pipeline_mode = #tpu.pipeline_mode<synchronous>, transform_indices = @transform_2, window_bounds = array<i64: 8, 128>}, {pipeline_mode = #tpu.pipeline_mode<synchronous>, transform_indices = @transform_3, window_bounds = array<i64: 128, 128>}, {pipeline_mode = #tpu.pipeline_mode<synchronous>, transform_indices = @transform_4, window_bounds = array<i64: 128, 128>}, {pipeline_mode = #tpu.pipeline_mode<synchronous>, transform_indices = @transform_5, window_bounds = array<i64: 1, 128>}, {transform_indices = @transform_6, window_bounds = array<i64: 8, 128>}]} {
    %c0 = arith.constant 0 : index
    %c0_0 = arith.constant 0 : index
    %0 = vector.load %arg1[%c0, %c0_0] : memref<8x128xbf16, #tpu.memory_space<vmem>>, vector<8x128xbf16>
    %c0_1 = arith.constant 0 : index
    %c0_2 = arith.constant 0 : index
    %c0_3 = arith.constant 0 : index
    %1 = vector.load %arg2[%c0_1, %c0_2, %c0_3] : memref<2x128x128xbf16, #tpu.memory_space<vmem>>, vector<1x128x128xbf16>
    %2 = vector.shape_cast %1 : vector<1x128x128xbf16> to vector<128x128xbf16>
    %c0_4 = arith.constant 0 : index
    %c0_5 = arith.constant 0 : index
    %3 = vector.load %arg3[%c0_4, %c0_5] : memref<8x128xf32, #tpu.memory_space<vmem>>, vector<1x128xf32>
    %cst = arith.constant dense<0.000000e+00> : vector<8x128xf32>
    %4 = tpu.matmul %0, %2, %cst {dimension_numbers = #tpu.dot_dimension_numbers<[1], [0], [0], [1], [0, 0, 1, 1], [], []>} : vector<8x128xbf16>, vector<128x128xbf16>, vector<8x128xf32> -> vector<8x128xf32>
    %5 = vector.broadcast %3 : vector<1x128xf32> to vector<8x128xf32>
    %6 = arith.addf %4, %5 : vector<8x128xf32>
    %cst_6 = arith.constant 0.000000e+00 : f32
    %7 = vector.broadcast %cst_6 : f32 to vector<8x128xf32>
    %8 = arith.maximumf %6, %7 : vector<8x128xf32>
    %9 = arith.truncf %8 : vector<8x128xf32> to vector<8x128xbf16>
    %c1 = arith.constant 1 : index
    %c0_7 = arith.constant 0 : index
    %c0_8 = arith.constant 0 : index
    %10 = vector.load %arg2[%c1, %c0_7, %c0_8] : memref<2x128x128xbf16, #tpu.memory_space<vmem>>, vector<1x128x128xbf16>
    %11 = vector.shape_cast %10 : vector<1x128x128xbf16> to vector<128x128xbf16>
    %c1_9 = arith.constant 1 : index
    %c0_10 = arith.constant 0 : index
    %12 = vector.load %arg3[%c1_9, %c0_10] : memref<8x128xf32, #tpu.memory_space<vmem>>, vector<1x128xf32>
    %cst_11 = arith.constant dense<0.000000e+00> : vector<8x128xf32>
    %13 = tpu.matmul %9, %11, %cst_11 {dimension_numbers = #tpu.dot_dimension_numbers<[1], [0], [0], [1], [0, 0, 1, 1], [], []>} : vector<8x128xbf16>, vector<128x128xbf16>, vector<8x128xf32> -> vector<8x128xf32>
    %14 = vector.broadcast %12 : vector<1x128xf32> to vector<8x128xf32>
    %15 = arith.addf %13, %14 : vector<8x128xf32>
    %cst_12 = arith.constant 0.000000e+00 : f32
    %16 = vector.broadcast %cst_12 : f32 to vector<8x128xf32>
    %17 = arith.maximumf %15, %16 : vector<8x128xf32>
    %18 = arith.truncf %17 : vector<8x128xf32> to vector<8x128xbf16>
    %c0_13 = arith.constant 0 : index
    %c0_14 = arith.constant 0 : index
    %19 = vector.load %arg1[%c0_13, %c0_14] : memref<8x128xbf16, #tpu.memory_space<vmem>>, vector<8x128xbf16>
    %c0_15 = arith.constant 0 : index
    %c0_16 = arith.constant 0 : index
    %20 = vector.load %arg4[%c0_15, %c0_16] : memref<128x128xbf16, #tpu.memory_space<vmem>>, vector<128x128xbf16>
    %cst_17 = arith.constant dense<0.000000e+00> : vector<8x128xf32>
    %21 = tpu.matmul %19, %20, %cst_17 {dimension_numbers = #tpu.dot_dimension_numbers<[1], [0], [0], [1], [0, 0, 1, 1], [], []>} : vector<8x128xbf16>, vector<128x128xbf16>, vector<8x128xf32> -> vector<8x128xf32>
    %c0_18 = arith.constant 0 : index
    %c0_19 = arith.constant 0 : index
    %22 = vector.load %arg5[%c0_18, %c0_19] : memref<128x128xbf16, #tpu.memory_space<vmem>>, vector<128x128xbf16>
    %cst_20 = arith.constant dense<0.000000e+00> : vector<8x128xf32>
    %23 = tpu.matmul %18, %22, %cst_20 {dimension_numbers = #tpu.dot_dimension_numbers<[1], [0], [0], [1], [0, 0, 1, 1], [], []>} : vector<8x128xbf16>, vector<128x128xbf16>, vector<8x128xf32> -> vector<8x128xf32>
    %24 = arith.addf %21, %23 : vector<8x128xf32>
    %c0_21 = arith.constant 0 : index
    %c0_22 = arith.constant 0 : index
    %25 = vector.load %arg6[%c0_21, %c0_22] : memref<1x128xf32, #tpu.memory_space<vmem>>, vector<1x128xf32>
    %26 = vector.broadcast %25 : vector<1x128xf32> to vector<8x128xf32>
    %27 = arith.addf %24, %26 : vector<8x128xf32>
    %c0_23 = arith.constant 0 : index
    %c0_24 = arith.constant 0 : index
    %28 = vector.load %arg7[%c0_23, %c0_24] : memref<8x128xf32, #tpu.memory_space<vmem>>, vector<8x128xf32>
    tpu.vector_store %arg7[%c0_23, %c0_24], %27 {strides = array<i32>} : memref<8x128xf32, #tpu.memory_space<vmem>>, vector<8x128xf32>,
    return
  }
  func.func @transform_0(%arg0: i32) -> (i32, i32) {
    %c0_i32 = arith.constant 0 : i32
    %c0_i32_0 = arith.constant 0 : i32
    return %arg0, %c0_i32 : i32, i32
  }
  func.func @transform_1(%arg0: i32) -> (i32, i32, i32) {
    %c0_i32 = arith.constant 0 : i32
    %c0_i32_0 = arith.constant 0 : i32
    %c0_i32_1 = arith.constant 0 : i32
    %c0_i32_2 = arith.constant 0 : i32
    return %c0_i32, %c0_i32_0, %c0_i32_1 : i32, i32, i32
  }
  func.func @transform_2(%arg0: i32) -> (i32, i32) {
    %c0_i32 = arith.constant 0 : i32
    %c0_i32_0 = arith.constant 0 : i32
    %c0_i32_1 = arith.constant 0 : i32
    return %c0_i32, %c0_i32_0 : i32, i32
  }
  func.func @transform_3(%arg0: i32) -> (i32, i32) {
    %c0_i32 = arith.constant 0 : i32
    %c0_i32_0 = arith.constant 0 : i32
    %c0_i32_1 = arith.constant 0 : i32
    return %c0_i32, %c0_i32_0 : i32, i32
  }
  func.func @transform_4(%arg0: i32) -> (i32, i32) {
    %c0_i32 = arith.constant 0 : i32
    %c0_i32_0 = arith.constant 0 : i32
    %c0_i32_1 = arith.constant 0 : i32
    return %c0_i32, %c0_i32_0 : i32, i32
  }
  func.func @transform_5(%arg0: i32) -> (i32, i32) {
    %c0_i32 = arith.constant 0 : i32
    %c0_i32_0 = arith.constant 0 : i32
    %c0_i32_1 = arith.constant 0 : i32
    return %c0_i32, %c0_i32_0 : i32, i32
  }
  func.func @transform_6(%arg0: i32) -> (i32, i32) {
    %c0_i32 = arith.constant 0 : i32
    %c0_i32_0 = arith.constant 0 : i32
    return %arg0, %c0_i32 : i32, i32
  }
}

</mosaic_0001>

<llo_original>
// kernel: tpu_custom_call.1
$region0: #{tpu_custom_call.1}
  #allocation0 [shape = 'u32[]', space=smem, size = 0x4, offset = 0x4, fixed_abs, tag = 'smem constant byte address 0x4 - core index']
  #allocation1 [shape = 'u32[144,128]{1,0:T(1,128)}', space=vmem, size = 0x12000, scoped, tag = 'internal scratch']
  %s0 = inlined_call_operand.hbm [shape: bf16[8,128], index: 0, kind: input, shape index: {}]
  %s1 = inlined_call_operand.hbm [shape: bf16[2,128,128], index: 1, kind: input, shape index: {}]
  %s2 = inlined_call_operand.hbm [shape: f32[8,128], index: 2, kind: input, shape index: {}]
  %s3 = inlined_call_operand.hbm [shape: bf16[128,128], index: 3, kind: input, shape index: {}]
  %s4 = inlined_call_operand.hbm [shape: bf16[128,128], index: 4, kind: input, shape index: {}]
  %s5 = inlined_call_operand.vmem [shape: f32[1,128], index: 5, kind: input, shape index: {}]
  %s6 = inlined_call_operand.hbm [shape: f32[8,128], index: 6, kind: output, shape index: {}]
  %s7 = sld [smem:[#allocation0]]
  $region54: #{tpu_custom_call.1} parent=0
    _
  %s9 = ssub.s32 1, %s7
  %s10 = scalar_select 0, %s9, %s7
  $region1: #{tpu_custom_call.1} parent=0
    #allocation2 [shape = 'u8[2048]{0}', space=vmem, size = 0x800, scoped, tag = 'input window, operand 0, single buffered']
    #allocation3 [shape = 's32[1]{0}', space=sflag, size = 0x4, scoped, tag = 'scoped memory for tpu_custom_call.1']
    #allocation4 [shape = 's32[1]{0}', space=sflag, size = 0x4, scoped, tag = 'scoped memory for tpu_custom_call.1']
    #allocation5 [shape = 'u8[65536]{0}', space=vmem, size = 0x10000, scoped, tag = 'input window, operand 1, single buffered']
    #allocation6 [shape = 's32[1]{0}', space=sflag, size = 0x4, scoped, tag = 'scoped memory for tpu_custom_call.1']
    #allocation7 [shape = 'u8[4096]{0}', space=vmem, size = 0x1000, scoped, tag = 'input window, operand 2, single buffered']
    #allocation8 [shape = 'u8[32768]{0}', space=vmem, size = 0x8000, scoped, tag = 'input window, operand 3, single buffered']
    #allocation9 [shape = 's32[1]{0}', space=sflag, size = 0x4, scoped, tag = 'scoped memory for tpu_custom_call.1']
    #allocation10 [shape = 'u8[32768]{0}', space=vmem, size = 0x8000, scoped, tag = 'input window, operand 4, single buffered']
    #allocation11 [shape = 'u8[4096]{0}', space=vmem, size = 0x1000, scoped, tag = 'output window, operand 0, single buffered']
    %11 = vsyncpa [#allocation3], 0
    %12 = vsyncpa [#allocation6], 0
    %13 = vsyncpa [#allocation9], 0
    %14 = vsyncpa [#allocation4], 0
    // Predicated region
    $region2: #{tpu_custom_call.1} parent=1 // pred_check
      _
    $region3: #{tpu_custom_call.1} parent=1 // pred_check_branch
      %16 = sbr.rel (0) target = $region5
    $region4: #{tpu_custom_call.1} parent=1 // pred_region
      %s18 = ssub.s32 64, 64
      %19 = vsyncadd [#allocation3], %s18
      %s21 = sshll.u32 [#allocation2], 4
      %s22 = int_to_ptr.vmem [resolvable:$true] %s21
      %24 = dma.hbm_to_vmem [thread:$0]  %s0, 64, %s22, [#allocation3]
    $region5: #{tpu_custom_call.1} parent=1 // pred_fallthru
      _
    // Predicated region
    $region6: #{tpu_custom_call.1} parent=1 // pred_check
      _
    $region7: #{tpu_custom_call.1} parent=1 // pred_check_branch
      %26 = sbr.rel (0) target = $region9
    $region8: #{tpu_custom_call.1} parent=1 // pred_region
      %s28 = ssub.s32 2048, 2048
      %29 = vsyncadd [#allocation6], %s28
      %s30 = sshll.u32 [#allocation5], 4
      %s31 = int_to_ptr.vmem [resolvable:$true] %s30
      %36 = dma.hbm_to_vmem [thread:$0]  %s1, 2048, %s31, [#allocation6], 64, 64, 4
    $region9: #{tpu_custom_call.1} parent=1 // pred_fallthru
      _
    // Predicated region
    $region10: #{tpu_custom_call.1} parent=1 // pred_check
      _
    $region11: #{tpu_custom_call.1} parent=1 // pred_check_branch
      %38 = sbr.rel (0) target = $region13
    $region12: #{tpu_custom_call.1} parent=1 // pred_region
      %s40 = ssub.s32 128, 128
      %41 = vsyncadd [#allocation6], %s40
      %s43 = sshll.u32 [#allocation7], 4
      %s44 = int_to_ptr.vmem [resolvable:$true] %s43
      %46 = dma.hbm_to_vmem [thread:$0]  %s2, 128, %s44, [#allocation6]
    $region13: #{tpu_custom_call.1} parent=1 // pred_fallthru
      _
    // Predicated region
    $region14: #{tpu_custom_call.1} parent=1 // pred_check
      _
    $region15: #{tpu_custom_call.1} parent=1 // pred_check_branch
      %48 = sbr.rel (0) target = $region17
    $region16: #{tpu_custom_call.1} parent=1 // pred_region
      %s50 = ssub.s32 1024, 1024
      %51 = vsyncadd [#allocation9], %s50
      %s52 = sshll.u32 [#allocation8], 4
      %s53 = int_to_ptr.vmem [resolvable:$true] %s52
      %58 = dma.hbm_to_vmem [thread:$0]  %s3, 1024, %s53, [#allocation9], 64, 64, 4
    $region17: #{tpu_custom_call.1} parent=1 // pred_fallthru
      _
    // Predicated region
    $region18: #{tpu_custom_call.1} parent=1 // pred_check
      _
    $region19: #{tpu_custom_call.1} parent=1 // pred_check_branch
      %60 = sbr.rel (0) target = $region21
    $region20: #{tpu_custom_call.1} parent=1 // pred_region
      %s62 = ssub.s32 1024, 1024
      %63 = vsyncadd [#allocation9], %s62
      %s64 = sshll.u32 [#allocation10], 4
      %s65 = int_to_ptr.vmem [resolvable:$true] %s64
      %70 = dma.hbm_to_vmem [thread:$0]  %s4, 1024, %s65, [#allocation9], 64, 64, 4
    $region21: #{tpu_custom_call.1} parent=1 // pred_fallthru
      _
    // Predicated region
    $region22: #{tpu_custom_call.1} parent=1 // pred_check
      _
    $region23: #{tpu_custom_call.1} parent=1 // pred_check_branch
      %72 = sbr.rel (0) target = $region25
    $region24: #{tpu_custom_call.1} parent=1 // pred_region
      _
    $region25: #{tpu_custom_call.1} parent=1 // pred_fallthru
      _
    // Predicated region
    $region26: #{tpu_custom_call.1} parent=1 // pred_check
      _
    $region27: #{tpu_custom_call.1} parent=1 // pred_check_branch
      %74 = sbr.rel (0) target = $region29
    $region28: #{tpu_custom_call.1} parent=1 // pred_region
      %75 = dma.done [#allocation3], 64
    $region29: #{tpu_custom_call.1} parent=1 // pred_fallthru
      _
    // Predicated region
    $region30: #{tpu_custom_call.1} parent=1 // pred_check
      _
    $region31: #{tpu_custom_call.1} parent=1 // pred_check_branch
      %77 = sbr.rel (0) target = $region33
    $region32: #{tpu_custom_call.1} parent=1 // pred_region
      %78 = dma.done [#allocation6], 2048
    $region33: #{tpu_custom_call.1} parent=1 // pred_fallthru
      _
    // Predicated region
    $region34: #{tpu_custom_call.1} parent=1 // pred_check
      _
    $region35: #{tpu_custom_call.1} parent=1 // pred_check_branch
      %80 = sbr.rel (0) target = $region37
    $region36: #{tpu_custom_call.1} parent=1 // pred_region
      %81 = dma.done [#allocation6], 128
    $region37: #{tpu_custom_call.1} parent=1 // pred_fallthru
      _
    // Predicated region
    $region38: #{tpu_custom_call.1} parent=1 // pred_check
      _
    $region39: #{tpu_custom_call.1} parent=1 // pred_check_branch
      %83 = sbr.rel (0) target = $region41
    $region40: #{tpu_custom_call.1} parent=1 // pred_region
      %84 = dma.done [#allocation9], 1024
    $region41: #{tpu_custom_call.1} parent=1 // pred_fallthru
      _
    // Predicated region
    $region42: #{tpu_custom_call.1} parent=1 // pred_check
      _
    $region43: #{tpu_custom_call.1} parent=1 // pred_check_branch
      %86 = sbr.rel (0) target = $region45
    $region44: #{tpu_custom_call.1} parent=1 // pred_region
      %87 = dma.done [#allocation9], 1024
    $region45: #{tpu_custom_call.1} parent=1 // pred_fallthru
      _
    %v89 = vld [vmem:[#allocation2] sm:$0xf]
    %v90 = vld [vmem:[#allocation5] sm:$0xf]
    %v91 = vld [vmem:[#allocation5 + $0x4] sm:$0xf]
    %v92 = vld [vmem:[#allocation5 + $0x8] sm:$0xf]
    %v93 = vld [vmem:[#allocation5 + $0xc] sm:$0xf]
    %v94 = vld [vmem:[#allocation5 + $0x10] sm:$0xf]
    %v95 = vld [vmem:[#allocation5 + $0x14] sm:$0xf]
    %v96 = vld [vmem:[#allocation5 + $0x18] sm:$0xf]
    %v97 = vld [vmem:[#allocation5 + $0x1c] sm:$0xf]
    %v98 = vld [vmem:[#allocation5 + $0x20] sm:$0xf]
    %v99 = vld [vmem:[#allocation5 + $0x24] sm:$0xf]
    %v100 = vld [vmem:[#allocation5 + $0x28] sm:$0xf]
    %v101 = vld [vmem:[#allocation5 + $0x2c] sm:$0xf]
    %v102 = vld [vmem:[#allocation5 + $0x30] sm:$0xf]
    %v103 = vld [vmem:[#allocation5 + $0x34] sm:$0xf]
    %v104 = vld [vmem:[#allocation5 + $0x38] sm:$0xf]
    %v105 = vld [vmem:[#allocation5 + $0x3c] sm:$0xf]
    %v106 = vld [vmem:[#allocation7] sm:$0x1]
    %v107 = vlaneseq
    %v108 = vshrl.u32 %v107, 7
    %v109 = vsub.s32 0, %v108
    %v110 = vrot.slane %v106, %v109
    %v127 = vunpack.c.l.b16 %v90
    %v128 = vunpack.c.l.b16 %v91
    %v129 = vunpack.c.l.b16 %v92
    %v130 = vunpack.c.l.b16 %v93
    %v131 = vunpack.c.l.b16 %v94
    %v132 = vunpack.c.l.b16 %v95
    %v133 = vunpack.c.l.b16 %v96
    %v134 = vunpack.c.l.b16 %v97
    %v135 = vunpack.c.l.b16 %v98
    %v136 = vunpack.c.l.b16 %v99
    %v137 = vunpack.c.l.b16 %v100
    %v138 = vunpack.c.l.b16 %v101
    %v139 = vunpack.c.l.b16 %v102
    %v140 = vunpack.c.l.b16 %v103
    %v141 = vunpack.c.l.b16 %v104
    %v142 = vunpack.c.l.b16 %v105
    %v143 = vpack.c.b16 %v128, %v127
    %v144 = vpack.c.b16 %v130, %v129
    %v145 = vpack.c.b16 %v132, %v131
    %v146 = vpack.c.b16 %v134, %v133
    %v147 = vpack.c.b16 %v136, %v135
    %v148 = vpack.c.b16 %v138, %v137
    %v149 = vpack.c.b16 %v140, %v139
    %v150 = vpack.c.b16 %v142, %v141
    %159 = vmatprep.subr.bf16.mxu0 0
    %160 = vmatpush1.bf16.msra.mxu0 %v143
    %161 = vmatprep.subr.bf16.mxu0 0
    %162 = vmatpush1.bf16.msra.mxu0 %v144
    %163 = vmatprep.subr.bf16.mxu0 0
    %164 = vmatpush1.bf16.msra.mxu0 %v145
    %165 = vmatprep.subr.bf16.mxu0 0
    %166 = vmatpush1.bf16.msra.mxu0 %v146
    %167 = vmatprep.subr.bf16.mxu0 0
    %168 = vmatpush1.bf16.msra.mxu0 %v147
    %169 = vmatprep.subr.bf16.mxu0 0
    %170 = vmatpush1.bf16.msra.mxu0 %v148
    %171 = vmatprep.subr.bf16.mxu0 0
    %172 = vmatpush1.bf16.msra.mxu0 %v149
    %173 = vmatprep.subr.bf16.mxu0 0
    %174 = vmatpush1.bf16.msra.mxu0 %v150
    %175 = vmatprep.subr.bf16.mxu0 0
    %176 = vmatpush1.bf16.msra.mxu0 0
    %177 = vmatprep.subr.bf16.mxu0 0
    %178 = vmatpush1.bf16.msra.mxu0 0
    %179 = vmatprep.subr.bf16.mxu0 0
    %180 = vmatpush1.bf16.msra.mxu0 0
    %181 = vmatprep.subr.bf16.mxu0 0
    %182 = vmatpush1.bf16.msra.mxu0 0
    %183 = vmatprep.subr.bf16.mxu0 0
    %184 = vmatpush1.bf16.msra.mxu0 0
    %185 = vmatprep.subr.bf16.mxu0 0
    %186 = vmatpush1.bf16.msra.mxu0 0
    %187 = vmatprep.subr.bf16.mxu0 0
    %188 = vmatpush1.bf16.msra.mxu0 0
    %189 = vmatprep.subr.bf16.mxu0 0
    %190 = vmatpush1.bf16.msra.mxu0 0
    %191 = vmatprep.mubr.bf16.mxu0 0
    %192 = vmatmul.mubr.bf16.gmra.mrb[0].mxu0 %v89
    %v193 = vpop.f32.mrb[0].mxu0
    %v194 = vadd.f32 %v110, %v193
    %v195 = vpop.f32.mrb[0].mxu0
    %v196 = vpop.f32.mrb[0].mxu0
    %v197 = vpop.f32.mrb[0].mxu0
    %198 = vdwg.mxu0
    %v199 = vmax.f32 %v194, 0.0
    %v200 = vpack.c.bf16 %v199, %v199
    %s201 = scalar_lea.vmem [#allocation5], 64
    %v202 = vld [vmem:[%s201] sm:$0xf]
    %v203 = vld [vmem:[%s201 + $0x4] sm:$0xf]
    %v204 = vld [vmem:[%s201 + $0x8] sm:$0xf]
    %v205 = vld [vmem:[%s201 + $0xc] sm:$0xf]
    %v206 = vld [vmem:[%s201 + $0x10] sm:$0xf]
    %v207 = vld [vmem:[%s201 + $0x14] sm:$0xf]
    %v208 = vld [vmem:[%s201 + $0x18] sm:$0xf]
    %v209 = vld [vmem:[%s201 + $0x1c] sm:$0xf]
    %v210 = vld [vmem:[%s201 + $0x20] sm:$0xf]
    %v211 = vld [vmem:[%s201 + $0x24] sm:$0xf]
    %v212 = vld [vmem:[%s201 + $0x28] sm:$0xf]
    %v213 = vld [vmem:[%s201 + $0x2c] sm:$0xf]
    %v214 = vld [vmem:[%s201 + $0x30] sm:$0xf]
    %v215 = vld [vmem:[%s201 + $0x34] sm:$0xf]
    %v216 = vld [vmem:[%s201 + $0x38] sm:$0xf]
    %v217 = vld [vmem:[%s201 + $0x3c] sm:$0xf]
    %v218 = vld [vmem:[#allocation7 + $0x1] sm:$0x1]
    %v219 = vlaneseq
    %v220 = vshrl.u32 %v219, 7
    %v221 = vsub.s32 0, %v220
    %v222 = vrot.slane %v218, %v221
    %v239 = vunpack.c.l.b16 %v202
    %v240 = vunpack.c.l.b16 %v203
    %v241 = vunpack.c.l.b16 %v204
    %v242 = vunpack.c.l.b16 %v205
    %v243 = vunpack.c.l.b16 %v206
    %v244 = vunpack.c.l.b16 %v207
    %v245 = vunpack.c.l.b16 %v208
    %v246 = vunpack.c.l.b16 %v209
    %v247 = vunpack.c.l.b16 %v210
    %v248 = vunpack.c.l.b16 %v211
    %v249 = vunpack.c.l.b16 %v212
    %v250 = vunpack.c.l.b16 %v213
    %v251 = vunpack.c.l.b16 %v214
    %v252 = vunpack.c.l.b16 %v215
    %v253 = vunpack.c.l.b16 %v216
    %v254 = vunpack.c.l.b16 %v217
    %v255 = vpack.c.b16 %v240, %v239
    %v256 = vpack.c.b16 %v242, %v241
    %v257 = vpack.c.b16 %v244, %v243
    %v258 = vpack.c.b16 %v246, %v245
    %v259 = vpack.c.b16 %v248, %v247
    %v260 = vpack.c.b16 %v250, %v249
    %v261 = vpack.c.b16 %v252, %v251
    %v262 = vpack.c.b16 %v254, %v253
    %271 = vmatprep.subr.bf16.mxu0 0
    %272 = vmatpush1.bf16.msra.mxu0 %v255
    %273 = vmatprep.subr.bf16.mxu0 0
    %274 = vmatpush1.bf16.msra.mxu0 %v256
    %275 = vmatprep.subr.bf16.mxu0 0
    %276 = vmatpush1.bf16.msra.mxu0 %v257
    %277 = vmatprep.subr.bf16.mxu0 0
    %278 = vmatpush1.bf16.msra.mxu0 %v258
    %279 = vmatprep.subr.bf16.mxu0 0
    %280 = vmatpush1.bf16.msra.mxu0 %v259
    %281 = vmatprep.subr.bf16.mxu0 0
    %282 = vmatpush1.bf16.msra.mxu0 %v260
    %283 = vmatprep.subr.bf16.mxu0 0
    %284 = vmatpush1.bf16.msra.mxu0 %v261
    %285 = vmatprep.subr.bf16.mxu0 0
    %286 = vmatpush1.bf16.msra.mxu0 %v262
    %287 = vmatprep.subr.bf16.mxu0 0
    %288 = vmatpush1.bf16.msra.mxu0 0
    %289 = vmatprep.subr.bf16.mxu0 0
    %290 = vmatpush1.bf16.msra.mxu0 0
    %291 = vmatprep.subr.bf16.mxu0 0
    %292 = vmatpush1.bf16.msra.mxu0 0
    %293 = vmatprep.subr.bf16.mxu0 0
    %294 = vmatpush1.bf16.msra.mxu0 0
    %295 = vmatprep.subr.bf16.mxu0 0
    %296 = vmatpush1.bf16.msra.mxu0 0
    %297 = vmatprep.subr.bf16.mxu0 0
    %298 = vmatpush1.bf16.msra.mxu0 0
    %299 = vmatprep.subr.bf16.mxu0 0
    %300 = vmatpush1.bf16.msra.mxu0 0
    %301 = vmatprep.subr.bf16.mxu0 0
    %302 = vmatpush1.bf16.msra.mxu0 0
    %303 = vmatprep.mubr.bf16.mxu0 0
    %304 = vmatmul.mubr.bf16.gmra.mrb[0].mxu0 %v200
    %v305 = vpop.f32.mrb[0].mxu0
    %v306 = vadd.f32 %v222, %v305
    %v307 = vpop.f32.mrb[0].mxu0
    %v308 = vpop.f32.mrb[0].mxu0
    %v309 = vpop.f32.mrb[0].mxu0
    %310 = vdwg.mxu0
    %v311 = vmax.f32 %v306, 0.0
    %v312 = vpack.c.bf16 %v311, %v311
    %v313 = vld [vmem:[#allocation8] sm:$0xf]
    %v314 = vld [vmem:[#allocation8 + $0x4] sm:$0xf]
    %v315 = vld [vmem:[#allocation8 + $0x8] sm:$0xf]
    %v316 = vld [vmem:[#allocation8 + $0xc] sm:$0xf]
    %v317 = vld [vmem:[#allocation8 + $0x10] sm:$0xf]
    %v318 = vld [vmem:[#allocation8 + $0x14] sm:$0xf]
    %v319 = vld [vmem:[#allocation8 + $0x18] sm:$0xf]
    %v320 = vld [vmem:[#allocation8 + $0x1c] sm:$0xf]
    %v321 = vld [vmem:[#allocation8 + $0x20] sm:$0xf]
    %v322 = vld [vmem:[#allocation8 + $0x24] sm:$0xf]
    %v323 = vld [vmem:[#allocation8 + $0x28] sm:$0xf]
    %v324 = vld [vmem:[#allocation8 + $0x2c] sm:$0xf]
    %v325 = vld [vmem:[#allocation8 + $0x30] sm:$0xf]
    %v326 = vld [vmem:[#allocation8 + $0x34] sm:$0xf]
    %v327 = vld [vmem:[#allocation8 + $0x38] sm:$0xf]
    %v328 = vld [vmem:[#allocation8 + $0x3c] sm:$0xf]
    %v329 = vld [vmem:[#allocation10] sm:$0xf]
    %v330 = vld [vmem:[#allocation10 + $0x4] sm:$0xf]
    %v331 = vld [vmem:[#allocation10 + $0x8] sm:$0xf]
    %v332 = vld [vmem:[#allocation10 + $0xc] sm:$0xf]
    %v333 = vld [vmem:[#allocation10 + $0x10] sm:$0xf]
    %v334 = vld [vmem:[#allocation10 + $0x14] sm:$0xf]
    %v335 = vld [vmem:[#allocation10 + $0x18] sm:$0xf]
    %v336 = vld [vmem:[#allocation10 + $0x1c] sm:$0xf]
    %v337 = vld [vmem:[#allocation10 + $0x20] sm:$0xf]
    %v338 = vld [vmem:[#allocation10 + $0x24] sm:$0xf]
    %v339 = vld [vmem:[#allocation10 + $0x28] sm:$0xf]
    %v340 = vld [vmem:[#allocation10 + $0x2c] sm:$0xf]
    %v341 = vld [vmem:[#allocation10 + $0x30] sm:$0xf]
    %v342 = vld [vmem:[#allocation10 + $0x34] sm:$0xf]
    %v343 = vld [vmem:[#allocation10 + $0x38] sm:$0xf]
    %v344 = vld [vmem:[#allocation10 + $0x3c] sm:$0xf]
    %v361 = vunpack.c.l.b16 %v329
    %v362 = vunpack.c.l.b16 %v330
    %v363 = vunpack.c.l.b16 %v331
    %v364 = vunpack.c.l.b16 %v332
    %v365 = vunpack.c.l.b16 %v333
    %v366 = vunpack.c.l.b16 %v334
    %v367 = vunpack.c.l.b16 %v335
    %v368 = vunpack.c.l.b16 %v336
    %v369 = vunpack.c.l.b16 %v337
    %v370 = vunpack.c.l.b16 %v338
    %v371 = vunpack.c.l.b16 %v339
    %v372 = vunpack.c.l.b16 %v340
    %v373 = vunpack.c.l.b16 %v341
    %v374 = vunpack.c.l.b16 %v342
    %v375 = vunpack.c.l.b16 %v343
    %v376 = vunpack.c.l.b16 %v344
    %v377 = vpack.c.b16 %v362, %v361
    %v378 = vpack.c.b16 %v364, %v363
    %v379 = vpack.c.b16 %v366, %v365
    %v380 = vpack.c.b16 %v368, %v367
    %v381 = vpack.c.b16 %v370, %v369
    %v382 = vpack.c.b16 %v372, %v371
    %v383 = vpack.c.b16 %v374, %v373
    %v384 = vpack.c.b16 %v376, %v375
    %393 = vmatprep.subr.bf16.mxu0 0
    %394 = vmatpush1.bf16.msra.mxu0 %v377
    %395 = vmatprep.subr.bf16.mxu0 0
    %396 = vmatpush1.bf16.msra.mxu0 %v378
    %397 = vmatprep.subr.bf16.mxu0 0
    %398 = vmatpush1.bf16.msra.mxu0 %v379
    %399 = vmatprep.subr.bf16.mxu0 0
    %400 = vmatpush1.bf16.msra.mxu0 %v380
    %401 = vmatprep.subr.bf16.mxu0 0
    %402 = vmatpush1.bf16.msra.mxu0 %v381
    %403 = vmatprep.subr.bf16.mxu0 0
    %404 = vmatpush1.bf16.msra.mxu0 %v382
    %405 = vmatprep.subr.bf16.mxu0 0
    %406 = vmatpush1.bf16.msra.mxu0 %v383
    %407 = vmatprep.subr.bf16.mxu0 0
    %408 = vmatpush1.bf16.msra.mxu0 %v384
    %409 = vmatprep.subr.bf16.mxu0 0
    %410 = vmatpush1.bf16.msra.mxu0 0
    %411 = vmatprep.subr.bf16.mxu0 0
    %412 = vmatpush1.bf16.msra.mxu0 0
    %413 = vmatprep.subr.bf16.mxu0 0
    %414 = vmatpush1.bf16.msra.mxu0 0
    %415 = vmatprep.subr.bf16.mxu0 0
    %416 = vmatpush1.bf16.msra.mxu0 0
    %417 = vmatprep.subr.bf16.mxu0 0
    %418 = vmatpush1.bf16.msra.mxu0 0
    %419 = vmatprep.subr.bf16.mxu0 0
    %420 = vmatpush1.bf16.msra.mxu0 0
    %421 = vmatprep.subr.bf16.mxu0 0
    %422 = vmatpush1.bf16.msra.mxu0 0
    %423 = vmatprep.subr.bf16.mxu0 0
    %424 = vmatpush1.bf16.msra.mxu0 0
    %425 = vmatprep.mubr.bf16.mxu0 0
    %426 = vmatmul.mubr.bf16.gmra.mrb[0].mxu0 %v312
    %v427 = vpop.f32.mrb[0].mxu0
    %v428 = vadd.f32 0.0, %v427
    %v429 = vpop.f32.mrb[0].mxu0
    %v430 = vpop.f32.mrb[0].mxu0
    %v431 = vpop.f32.mrb[0].mxu0
    %432 = vdwg.mxu0
    %v449 = vunpack.c.l.b16 %v313
    %v450 = vunpack.c.l.b16 %v314
    %v451 = vunpack.c.l.b16 %v315
    %v452 = vunpack.c.l.b16 %v316
    %v453 = vunpack.c.l.b16 %v317
    %v454 = vunpack.c.l.b16 %v318
    %v455 = vunpack.c.l.b16 %v319
    %v456 = vunpack.c.l.b16 %v320
    %v457 = vunpack.c.l.b16 %v321
    %v458 = vunpack.c.l.b16 %v322
    %v459 = vunpack.c.l.b16 %v323
    %v460 = vunpack.c.l.b16 %v324
    %v461 = vunpack.c.l.b16 %v325
    %v462 = vunpack.c.l.b16 %v326
    %v463 = vunpack.c.l.b16 %v327
    %v464 = vunpack.c.l.b16 %v328
    %v465 = vpack.c.b16 %v450, %v449
    %v466 = vpack.c.b16 %v452, %v451
    %v467 = vpack.c.b16 %v454, %v453
    %v468 = vpack.c.b16 %v456, %v455
    %v469 = vpack.c.b16 %v458, %v457
    %v470 = vpack.c.b16 %v460, %v459
    %v471 = vpack.c.b16 %v462, %v461
    %v472 = vpack.c.b16 %v464, %v463
    %481 = vmatprep.subr.bf16.mxu0 0
    %482 = vmatpush1.bf16.msra.mxu0 %v465
    %483 = vmatprep.subr.bf16.mxu0 0
    %484 = vmatpush1.bf16.msra.mxu0 %v466
    %485 = vmatprep.subr.bf16.mxu0 0
    %486 = vmatpush1.bf16.msra.mxu0 %v467
    %487 = vmatprep.subr.bf16.mxu0 0
    %488 = vmatpush1.bf16.msra.mxu0 %v468
    %489 = vmatprep.subr.bf16.mxu0 0
    %490 = vmatpush1.bf16.msra.mxu0 %v469
    %491 = vmatprep.subr.bf16.mxu0 0
    %492 = vmatpush1.bf16.msra.mxu0 %v470
    %493 = vmatprep.subr.bf16.mxu0 0
    %494 = vmatpush1.bf16.msra.mxu0 %v471
    %495 = vmatprep.subr.bf16.mxu0 0
    %496 = vmatpush1.bf16.msra.mxu0 %v472
    %497 = vmatprep.subr.bf16.mxu0 0
    %498 = vmatpush1.bf16.msra.mxu0 0
    %499 = vmatprep.subr.bf16.mxu0 0
    %500 = vmatpush1.bf16.msra.mxu0 0
    %501 = vmatprep.subr.bf16.mxu0 0
    %502 = vmatpush1.bf16.msra.mxu0 0
    %503 = vmatprep.subr.bf16.mxu0 0
    %504 = vmatpush1.bf16.msra.mxu0 0
    %505 = vmatprep.subr.bf16.mxu0 0
    %506 = vmatpush1.bf16.msra.mxu0 0
    %507 = vmatprep.subr.bf16.mxu0 0
    %508 = vmatpush1.bf16.msra.mxu0 0
    %509 = vmatprep.subr.bf16.mxu0 0
    %510 = vmatpush1.bf16.msra.mxu0 0
    %511 = vmatprep.subr.bf16.mxu0 0
    %512 = vmatpush1.bf16.msra.mxu0 0
    %513 = vmatprep.mubr.bf16.mxu0 0
    %514 = vmatmul.mubr.bf16.gmra.mrb[0].mxu0 %v89
    %v515 = vpop.f32.mrb[0].mxu0
    %v516 = vadd.f32 %v428, %v515
    %v517 = vpop.f32.mrb[0].mxu0
    %v518 = vpop.f32.mrb[0].mxu0
    %v519 = vpop.f32.mrb[0].mxu0
    %520 = vdwg.mxu0
    %v521 = vld [vmem:[%s5] sm:$0x1]
    %v523 = vlaneseq
    %v524 = vshrl.u32 %v523, 7
    %v525 = vsub.s32 0, %v524
    %v526 = vrot.slane %v521, %v525
    %v528 = vadd.f32 %v516, %v526
    %529 = vst [vmem:[#allocation11] sm:$0xff] %v528
    // Predicated region
    $region46: #{tpu_custom_call.1} parent=1 // pred_check
      _
    $region47: #{tpu_custom_call.1} parent=1 // pred_check_branch
      %531 = sbr.rel (0) target = $region49
    $region48: #{tpu_custom_call.1} parent=1 // pred_region
      %s533 = ssub.s32 128, 128
      %534 = vsyncadd [#allocation4], %s533
      %s536 = sshll.u32 [#allocation11], 4
      %s537 = int_to_ptr.vmem [resolvable:$true] %s536
      %539 = dma.vmem_to_hbm [thread:$0]  %s537, 128, %s6, [#allocation4]
    $region49: #{tpu_custom_call.1} parent=1 // pred_fallthru
      _
    // Predicated region
    $region50: #{tpu_custom_call.1} parent=1 // pred_check
      _
    $region51: #{tpu_custom_call.1} parent=1 // pred_check_branch
      %541 = sbr.rel (0) target = $region53
    $region52: #{tpu_custom_call.1} parent=1 // pred_region
      %542 = dma.done [#allocation4], 128
    $region53: #{tpu_custom_call.1} parent=1 // pred_fallthru
      _
    %543 = vsyncpa [#allocation3], 1
    %544 = vsyncpa [#allocation6], 1
    %545 = vsyncpa [#allocation9], 1
    %546 = vsyncpa [#allocation4], 1

</llo_original>
